<compile_context>
chip_gen: v7x
topology: tpu7x:2x2x1
jax: 0.10.0
libtpu: 0.0.40
codegen_flags: <defaults>
</compile_context>

<pallas_src>
import jax
import jax.numpy as jnp
from jax.experimental import pallas as pl
from jax.experimental.pallas import tpu as pltpu


def _round_up(x, m):
    return (x + m - 1) // m * m


def _embed_kernel(x_ref, w1_ref, b1_ref, w2_ref, b2_ref, o_ref, acc_ref):
    # x_ref:   (tile_m, tile_k) bf16   rows = fused (anchor|pos|neg) batch
    # w1_ref:  (tile_k, hid)    bf16   K-slice of first-layer weights
    # b1_ref:  (1, hid)         f32
    # w2_ref:  (hid, emb)       bf16   full second-layer weights (VMEM-resident)
    # b2_ref:  (1, emb)         f32
    # o_ref:   (tile_m, emb)    f32
    # acc_ref: (tile_m, hid)    f32    K-reduction accumulator
    k = pl.program_id(1)

    @pl.when(k == 0)
    def _():
        acc_ref[...] = jnp.zeros_like(acc_ref)

    acc_ref[...] += jnp.dot(
        x_ref[...], w1_ref[...], preferred_element_type=jnp.float32
    )

    @pl.when(k == pl.num_programs(1) - 1)
    def _():
        h = jnp.maximum(acc_ref[...] + b1_ref[...], 0.0)          # bias + ReLU (f32)
        e = jnp.dot(
            h.astype(jnp.bfloat16), w2_ref[...],
            preferred_element_type=jnp.float32,
        )
        o_ref[...] = (e + b2_ref[...]).astype(o_ref.dtype)


def triplet_net(x1, x2, x3, w1, b1, w2, b2, *, tile_m=256, tile_k=512):
    """Pallas implementation of TripletNet.forward(x1, x2, x3).

    x1, x2, x3: (B, C, H, W) float32 (NCHW, same as PyTorch).
    Returns (out1, out2, out3), each (B, EMB) float32.
    """
    B = x1.shape[0]
    d_in = 1
    for d in x1.shape[1:]:
        d_in *= d
    hid = w1.shape[1]
    emb = w2.shape[1]

    # Fold the three weight-shared branches into the M (row) dimension:
    # one (3B, d_in) matmul instead of three tiny (B, d_in) ones.
    xs = jnp.concatenate(
        [x1.reshape(B, d_in), x2.reshape(B, d_in), x3.reshape(B, d_in)], axis=0
    )
    m = 3 * B

    # Tile sizes (respecting the (8, 128) constraint); pad M and K so the
    # grid divides evenly.  Zero-padding rows/K is numerically inert.
    tile_k = min(tile_k, _round_up(d_in, 128))
    d_in_p = _round_up(d_in, tile_k)
    tile_m = min(tile_m, _round_up(m, 8))
    m_p = _round_up(m, tile_m)

    xs = jnp.pad(xs, ((0, m_p - m), (0, d_in_p - d_in))).astype(jnp.bfloat16)
    w1_p = jnp.pad(w1, ((0, d_in_p - d_in), (0, 0))).astype(jnp.bfloat16)
    w2_b = w2.astype(jnp.bfloat16)
    b1_2d = b1.reshape(1, hid).astype(jnp.float32)
    b2_2d = b2.reshape(1, emb).astype(jnp.float32)

    grid = (m_p // tile_m, d_in_p // tile_k)

    out = pl.pallas_call(
        _embed_kernel,
        out_shape=jax.ShapeDtypeStruct((m_p, emb), jnp.float32),
        grid_spec=pltpu.PrefetchScalarGridSpec(
            num_scalar_prefetch=0,
            grid=grid,
            in_specs=[
                pl.BlockSpec((tile_m, tile_k), lambda i, k: (i, k)),
                pl.BlockSpec((tile_k, hid), lambda i, k: (k, 0)),
                pl.BlockSpec((1, hid), lambda i, k: (0, 0)),
                pl.BlockSpec((hid, emb), lambda i, k: (0, 0)),
                pl.BlockSpec((1, emb), lambda i, k: (0, 0)),
            ],
            out_specs=pl.BlockSpec((tile_m, emb), lambda i, k: (i, 0)),
            scratch_shapes=[pltpu.VMEM((tile_m, hid), jnp.float32)],
        ),
        compiler_params=pltpu.CompilerParams(
            dimension_semantics=("parallel", "arbitrary"),
        ),
    )(xs, w1_p, b1_2d, w2_b, b2_2d)

    # TripletNet.forward returns (output1, output2, output3).
    return out[:B], out[B:2 * B], out[2 * B:3 * B]


def _reference_bf16(x1, x2, x3, w1, b1, w2, b2):
    """Same arithmetic as the kernel (bf16 operands, f32 accumulation)."""
    w1b = w1.astype(jnp.bfloat16)
    w2b = w2.astype(jnp.bfloat16)

    def embed(x):
        xf = x.reshape(x.shape[0], -1).astype(jnp.bfloat16)
        h = jnp.dot(xf, w1b, preferred_element_type=jnp.float32) + b1
        h = jnp.maximum(h, 0.0)
        e = jnp.dot(h.astype(jnp.bfloat16), w2b,
                    preferred_element_type=jnp.float32) + b2
        return e

    return embed(x1), embed(x2), embed(x3)


def _reference_f32(x1, x2, x3, w1, b1, w2, b2):
    """Pure fp32 reference matching the original PyTorch module."""
    def embed(x):
        xf = x.reshape(x.shape[0], -1)
        h = jnp.maximum(xf @ w1 + b1, 0.0)
        return h @ w2 + b2

    return embed(x1), embed(x2), embed(x3)


if __name__ == "__main__":
    # Small shapes consistent with an image-triplet embedding net.
    B, C, H, W = 2, 4, 16, 16
    D_IN = C * H * W          # 1024
    HID = 128
    EMB = 128

    key = jax.random.PRNGKey(0)
    k1, k2, k3, kw1, kb1, kw2, kb2 = jax.random.split(key, 7)

    x1 = jax.random.normal(k1, (B, C, H, W), dtype=jnp.float32)
    x2 = jax.random.normal(k2, (B, C, H, W), dtype=jnp.float32)
    x3 = jax.random.normal(k3, (B, C, H, W), dtype=jnp.float32)

    # Deterministic synthetic parameters (no checkpoint loading).
    w1 = jax.random.normal(kw1, (D_IN, HID), dtype=jnp.float32) * 0.02
    b1 = jax.random.normal(kb1, (HID,), dtype=jnp.float32) * 0.01
    w2 = jax.random.normal(kw2, (HID, EMB), dtype=jnp.float32) * 0.02
    b2 = jax.random.normal(kb2, (EMB,), dtype=jnp.float32) * 0.01

    o1, o2, o3 = jax.jit(triplet_net)(x1, x2, x3, w1, b1, w2, b2)
    jax.block_until_ready((o1, o2, o3))

    assert o1.shape == (B, EMB) and o2.shape == (B, EMB) and o3.shape == (B, EMB)

    # Tight check against a reference using identical bf16/f32 arithmetic.
    rb1, rb2, rb3 = _reference_bf16(x1, x2, x3, w1, b1, w2, b2)
    assert jnp.allclose(o1, rb1, atol=2e-3, rtol=2e-3)
    assert jnp.allclose(o2, rb2, atol=2e-3, rtol=2e-3)
    assert jnp.allclose(o3, rb3, atol=2e-3, rtol=2e-3)

    # Loose check against the pure-fp32 PyTorch-equivalent reference
    # (bf16 operand quantization bounds the difference).
    rf1, rf2, rf3 = _reference_f32(x1, x2, x3, w1, b1, w2, b2)
    assert jnp.allclose(o1, rf1, atol=5e-2, rtol=5e-2)
    assert jnp.allclose(o2, rf2, atol=5e-2, rtol=5e-2)
    assert jnp.allclose(o3, rf3, atol=5e-2, rtol=5e-2)

    print("KERNEL_OK")
</pallas_src>

<mosaic_0001>
module attributes {stable_mosaic.version = 11 : i64} {
  func.func @_embed_kernel(%arg0: i32, %arg1: i32, %arg2: memref<8x512xbf16, #tpu.memory_space<vmem>>, %arg3: memref<512x128xbf16, #tpu.memory_space<vmem>>, %arg4: memref<1x128xf32, #tpu.memory_space<vmem>>, %arg5: memref<128x128xbf16, #tpu.memory_space<vmem>>, %arg6: memref<1x128xf32, #tpu.memory_space<vmem>>, %arg7: memref<8x128xf32, #tpu.memory_space<vmem>>, %arg8: memref<8x128xf32, #tpu.memory_space<vmem>>) attributes {dimension_semantics = [#tpu.dimension_semantics<parallel>, #tpu.dimension_semantics<arbitrary>], iteration_bounds = array<i64: 1, 2>, scalar_prefetch = 0 : i64, scratch_operands = 1 : i64, tpu.core_type = #tpu.core_type<tc>, window_params = [{transform_indices = @transform_0, window_bounds = array<i64: 8, 512>}, {transform_indices = @transform_1, window_bounds = array<i64: 512, 128>}, {pipeline_mode = #tpu.pipeline_mode<synchronous>, transform_indices = @transform_2, window_bounds = array<i64: 1, 128>}, {pipeline_mode = #tpu.pipeline_mode<synchronous>, transform_indices = @transform_3, window_bounds = array<i64: 128, 128>}, {pipeline_mode = #tpu.pipeline_mode<synchronous>, transform_indices = @transform_4, window_bounds = array<i64: 1, 128>}, {transform_indices = @transform_5, window_bounds = array<i64: 8, 128>}]} {
    %c0_i32 = arith.constant 0 : i32
    %0 = arith.cmpi eq, %arg1, %c0_i32 : i32
    %1 = arith.extui %0 : i1 to i32
    %c0_i32_0 = arith.constant 0 : i32
    %2 = arith.cmpi ne, %1, %c0_i32_0 : i32
    scf.if %2 {
      %cst_9 = arith.constant 0.000000e+00 : f32
      %12 = vector.broadcast %cst_9 : f32 to vector<8x128xf32>
      %c0_10 = arith.constant 0 : index
      %c0_11 = arith.constant 0 : index
      %13 = vector.load %arg8[%c0_10, %c0_11] : memref<8x128xf32, #tpu.memory_space<vmem>>, vector<8x128xf32>
      tpu.vector_store %arg8[%c0_10, %c0_11], %12 {strides = array<i32>} : memref<8x128xf32, #tpu.memory_space<vmem>>, vector<8x128xf32>,
    } else {
    }
    %c0 = arith.constant 0 : index
    %c0_1 = arith.constant 0 : index
    %3 = vector.load %arg8[%c0, %c0_1] : memref<8x128xf32, #tpu.memory_space<vmem>>, vector<8x128xf32>
    %c0_2 = arith.constant 0 : index
    %c0_3 = arith.constant 0 : index
    %4 = vector.load %arg2[%c0_2, %c0_3] : memref<8x512xbf16, #tpu.memory_space<vmem>>, vector<8x512xbf16>
    %c0_4 = arith.constant 0 : index
    %c0_5 = arith.constant 0 : index
    %5 = vector.load %arg3[%c0_4, %c0_5] : memref<512x128xbf16, #tpu.memory_space<vmem>>, vector<512x128xbf16>
    %cst = arith.constant dense<0.000000e+00> : vector<8x128xf32>
    %6 = tpu.matmul %4, %5, %cst {dimension_numbers = #tpu.dot_dimension_numbers<[1], [0], [0], [1], [0, 0, 1, 1], [], []>} : vector<8x512xbf16>, vector<512x128xbf16>, vector<8x128xf32> -> vector<8x128xf32>
    %7 = arith.addf %3, %6 : vector<8x128xf32>
    %c0_6 = arith.constant 0 : index
    %c0_7 = arith.constant 0 : index
    %8 = vector.load %arg8[%c0_6, %c0_7] : memref<8x128xf32, #tpu.memory_space<vmem>>, vector<8x128xf32>
    tpu.vector_store %arg8[%c0_6, %c0_7], %7 {strides = array<i32>} : memref<8x128xf32, #tpu.memory_space<vmem>>, vector<8x128xf32>,
    %c1_i32 = arith.constant 1 : i32
    %9 = arith.cmpi eq, %arg1, %c1_i32 : i32
    %10 = arith.extui %9 : i1 to i32
    %c0_i32_8 = arith.constant 0 : i32
    %11 = arith.cmpi ne, %10, %c0_i32_8 : i32
    scf.if %11 {
      %c0_9 = arith.constant 0 : index
      %c0_10 = arith.constant 0 : index
      %12 = vector.load %arg8[%c0_9, %c0_10] : memref<8x128xf32, #tpu.memory_space<vmem>>, vector<8x128xf32>
      %c0_11 = arith.constant 0 : index
      %c0_12 = arith.constant 0 : index
      %13 = vector.load %arg4[%c0_11, %c0_12] : memref<1x128xf32, #tpu.memory_space<vmem>>, vector<1x128xf32>
      %14 = vector.broadcast %13 : vector<1x128xf32> to vector<8x128xf32>
      %15 = arith.addf %12, %14 : vector<8x128xf32>
      %cst_13 = arith.constant 0.000000e+00 : f32
      %16 = vector.broadcast %cst_13 : f32 to vector<8x128xf32>
      %17 = arith.maximumf %15, %16 : vector<8x128xf32>
      %18 = arith.truncf %17 : vector<8x128xf32> to vector<8x128xbf16>
      %c0_14 = arith.constant 0 : index
      %c0_15 = arith.constant 0 : index
      %19 = vector.load %arg5[%c0_14, %c0_15] : memref<128x128xbf16, #tpu.memory_space<vmem>>, vector<128x128xbf16>
      %cst_16 = arith.constant dense<0.000000e+00> : vector<8x128xf32>
      %20 = tpu.matmul %18, %19, %cst_16 {dimension_numbers = #tpu.dot_dimension_numbers<[1], [0], [0], [1], [0, 0, 1, 1], [], []>} : vector<8x128xbf16>, vector<128x128xbf16>, vector<8x128xf32> -> vector<8x128xf32>
      %c0_17 = arith.constant 0 : index
      %c0_18 = arith.constant 0 : index
      %21 = vector.load %arg6[%c0_17, %c0_18] : memref<1x128xf32, #tpu.memory_space<vmem>>, vector<1x128xf32>
      %22 = vector.broadcast %21 : vector<1x128xf32> to vector<8x128xf32>
      %23 = arith.addf %20, %22 : vector<8x128xf32>
      %c0_19 = arith.constant 0 : index
      %c0_20 = arith.constant 0 : index
      %24 = vector.load %arg7[%c0_19, %c0_20] : memref<8x128xf32, #tpu.memory_space<vmem>>, vector<8x128xf32>
      tpu.vector_store %arg7[%c0_19, %c0_20], %23 {strides = array<i32>} : memref<8x128xf32, #tpu.memory_space<vmem>>, vector<8x128xf32>,
    } else {
    }
    return
  }
  func.func @transform_0(%arg0: i32, %arg1: i32) -> (i32, i32) {
    %c0_i32 = arith.constant 0 : i32
    return %arg0, %arg1 : i32, i32
  }
  func.func @transform_1(%arg0: i32, %arg1: i32) -> (i32, i32) {
    %c0_i32 = arith.constant 0 : i32
    %c0_i32_0 = arith.constant 0 : i32
    return %arg1, %c0_i32 : i32, i32
  }
  func.func @transform_2(%arg0: i32, %arg1: i32) -> (i32, i32) {
    %c0_i32 = arith.constant 0 : i32
    %c0_i32_0 = arith.constant 0 : i32
    %c0_i32_1 = arith.constant 0 : i32
    return %c0_i32, %c0_i32_0 : i32, i32
  }
  func.func @transform_3(%arg0: i32, %arg1: i32) -> (i32, i32) {
    %c0_i32 = arith.constant 0 : i32
    %c0_i32_0 = arith.constant 0 : i32
    %c0_i32_1 = arith.constant 0 : i32
    return %c0_i32, %c0_i32_0 : i32, i32
  }
  func.func @transform_4(%arg0: i32, %arg1: i32) -> (i32, i32) {
    %c0_i32 = arith.constant 0 : i32
    %c0_i32_0 = arith.constant 0 : i32
    %c0_i32_1 = arith.constant 0 : i32
    return %c0_i32, %c0_i32_0 : i32, i32
  }
  func.func @transform_5(%arg0: i32, %arg1: i32) -> (i32, i32) {
    %c0_i32 = arith.constant 0 : i32
    %c0_i32_0 = arith.constant 0 : i32
    return %arg0, %c0_i32 : i32, i32
  }
}

</mosaic_0001>

<llo_original>
// kernel: triplet_net.1
$region0: #{triplet_net.1}
  #allocation0 [shape = 'u32[]', space=smem, size = 0x4, offset = 0x4, fixed_abs, tag = 'smem constant byte address 0x4 - core index']
  #allocation1 [shape = 'u32[144,128]{1,0:T(1,128)}', space=vmem, size = 0x12000, scoped, tag = 'internal scratch']
  #allocation2 [shape = 'f32[8,128]{1,0:T(8,128)}', space=vmem, size = 0x1000, scoped, tag = 'scratch operand']
  %s0 = inlined_call_operand.vmem [shape: bf16[8,1024], index: 0, kind: input, shape index: {}]
  %s1 = inlined_call_operand.vmem [shape: bf16[1024,128], index: 1, kind: input, shape index: {}]
  %s2 = inlined_call_operand.vmem [shape: f32[1,128], index: 2, kind: input, shape index: {}]
  %s3 = inlined_call_operand.vmem [shape: bf16[128,128], index: 3, kind: input, shape index: {}]
  %s4 = inlined_call_operand.vmem [shape: f32[1,128], index: 4, kind: input, shape index: {}]
  %s5 = inlined_call_operand.vmem [shape: f32[8,128], index: 5, kind: output, shape index: {}]
  %s6 = sld [smem:[#allocation0]]
  $region61: #{triplet_net.1} parent=0
    _
  %s8 = ssub.s32 1, %s6
  %s9 = scalar_select 0, %s8, %s6
  loop: start=0, step=1, limit=4
  $region2: #{triplet_net.1} parent=0 // loop_pre_header
    _
  $region3: #{triplet_net.1} parent=0 // loop_header
    %s11 = sphi 0, %s15
    %p12 = scmp.ge.s32.totalorder %s11, 4
    %s18 = sphi 0, %s30
    %s19 = sphi 0, %s26
    %s20 = sphi 0, %s18
    %s21 = sphi 0, %s19
    %s22 = sphi 0, %s20
    %s23 = sphi 0, %s21
    %s35 = sphi 0, %s37
    %s38 = sphi 0, %s35
    %s39 = sphi 0, %s38
    %s55 = sphi 0, %s39
    %s61 = sphi 0, %s63
    %s64 = sphi 0, %s61
    %s65 = sphi 0, %s64
    %s81 = sphi 0, %s65
    %s85 = sphi 0, %s85
    %s87 = sphi 0, %s85
    %s88 = sphi 0, %s87
    %s102 = sphi 0, %s88
    %s106 = sphi 0, %s106
    %s108 = sphi 0, %s106
    %s109 = sphi 0, %s108
    %s123 = sphi 0, %s109
    %s127 = sphi 0, %s127
    %s129 = sphi 0, %s127
    %s130 = sphi 0, %s129
    %s144 = sphi 0, %s130
    %s150 = sphi 0, %s152
    %s153 = sphi 0, %s150
    %s154 = sphi 0, %s153
    %s170 = sphi 0, %s154
  $region4: #{triplet_net.1} parent=0 // loop_header_branch
    %14 = sbr.rel (%p12) target = $region8
  $region5: #{triplet_net.1} parent=0 // loop_body
    %s16 = ssub.s32 %s11, 1
    %s17 = ssub.s32 %s11, 2
    %s24 = sadd.s32 1, %s19
    %p25 = scmp.ge.s32.totalorder %s24, 2
    %s26 = scalar_select %p25, 0, %s24
    %s27 = sadd.s32 1, %s18
    %s28 = scalar_select %p25, %s27, %s18
    %p29 = scmp.ge.s32.totalorder %s28, 1
    %s30 = scalar_select %p29, 0, %s28
    %s31 = ssub.s32 %s18, %s30
    %s32 = ssub.s32 %s19, %s26
    %s33 = sor.u32 %s31, %s32
    %p34 = scmp.eq.s32.totalorder %s33, 0
    %s36 = sadd.s32 %s35, 1
    %s37 = scalar_select %p34, %s35, %s36
    %p40 = pneg %p34
    %p41 = scmp.eq.s32.totalorder %s11, 1
    %p42 = por %p40, %p41
    %p43 = scmp.ne.s32.totalorder %s35, %s38
    %p44 = scmp.eq.s32.totalorder %s11, 0
    %p45 = por %p43, %p44
    %p46 = scmp.ne.s32.totalorder %s35, %s38
    %p47 = scmp.eq.s32.totalorder %s16, 1
    %p48 = por %p46, %p47
    %p49 = scmp.ne.s32.totalorder %s38, %s39
    %p50 = scmp.eq.s32.totalorder %s16, 0
    %p51 = por %p49, %p50
    %p52 = scmp.ne.s32.totalorder %s38, %s39
    %p53 = scmp.eq.s32.totalorder %s17, 1
    %p54 = por %p52, %p53
    %p56 = scmp.ne.s32.totalorder %s39, %s55
    %p57 = scmp.eq.s32.totalorder %s17, 0
    %p58 = por %p56, %p57
    %s59 = ssub.s32 %s19, %s26
    %p60 = scmp.eq.s32.totalorder %s59, 0
    %s62 = sadd.s32 %s61, 1
    %s63 = scalar_select %p60, %s61, %s62
    %p66 = pneg %p60
    %p67 = scmp.eq.s32.totalorder %s11, 1
    %p68 = por %p66, %p67
    %p69 = scmp.ne.s32.totalorder %s61, %s64
    %p70 = scmp.eq.s32.totalorder %s11, 0
    %p71 = por %p69, %p70
    %p72 = scmp.ne.s32.totalorder %s61, %s64
    %p73 = scmp.eq.s32.totalorder %s16, 1
    %p74 = por %p72, %p73
    %p75 = scmp.ne.s32.totalorder %s64, %s65
    %p76 = scmp.eq.s32.totalorder %s16, 0
    %p77 = por %p75, %p76
    %p78 = scmp.ne.s32.totalorder %s64, %s65
    %p79 = scmp.eq.s32.totalorder %s17, 1
    %p80 = por %p78, %p79
    %p82 = scmp.ne.s32.totalorder %s65, %s81
    %p83 = scmp.eq.s32.totalorder %s17, 0
    %p84 = por %p82, %p83
    %s86 = sadd.s32 %s85, 1
    %p89 = scmp.eq.s32.totalorder %s11, 1
    %p90 = scmp.ne.s32.totalorder %s85, %s87
    %p91 = scmp.eq.s32.totalorder %s11, 0
    %p92 = por %p90, %p91
    %p93 = scmp.ne.s32.totalorder %s85, %s87
    %p94 = scmp.eq.s32.totalorder %s16, 1
    %p95 = por %p93, %p94
    %p96 = scmp.ne.s32.totalorder %s87, %s88
    %p97 = scmp.eq.s32.totalorder %s16, 0
    %p98 = por %p96, %p97
    %p99 = scmp.ne.s32.totalorder %s87, %s88
    %p100 = scmp.eq.s32.totalorder %s17, 1
    %p101 = por %p99, %p100
    %p103 = scmp.ne.s32.totalorder %s88, %s102
    %p104 = scmp.eq.s32.totalorder %s17, 0
    %p105 = por %p103, %p104
    %s107 = sadd.s32 %s106, 1
    %p110 = scmp.eq.s32.totalorder %s11, 1
    %p111 = scmp.ne.s32.totalorder %s106, %s108
    %p112 = scmp.eq.s32.totalorder %s11, 0
    %p113 = por %p111, %p112
    %p114 = scmp.ne.s32.totalorder %s106, %s108
    %p115 = scmp.eq.s32.totalorder %s16, 1
    %p116 = por %p114, %p115
    %p117 = scmp.ne.s32.totalorder %s108, %s109
    %p118 = scmp.eq.s32.totalorder %s16, 0
    %p119 = por %p117, %p118
    %p120 = scmp.ne.s32.totalorder %s108, %s109
    %p121 = scmp.eq.s32.totalorder %s17, 1
    %p122 = por %p120, %p121
    %p124 = scmp.ne.s32.totalorder %s109, %s123
    %p125 = scmp.eq.s32.totalorder %s17, 0
    %p126 = por %p124, %p125
    %s128 = sadd.s32 %s127, 1
    %p131 = scmp.eq.s32.totalorder %s11, 1
    %p132 = scmp.ne.s32.totalorder %s127, %s129
    %p133 = scmp.eq.s32.totalorder %s11, 0
    %p134 = por %p132, %p133
    %p135 = scmp.ne.s32.totalorder %s127, %s129
    %p136 = scmp.eq.s32.totalorder %s16, 1
    %p137 = por %p135, %p136
    %p138 = scmp.ne.s32.totalorder %s129, %s130
    %p139 = scmp.eq.s32.totalorder %s16, 0
    %p140 = por %p138, %p139
    %p141 = scmp.ne.s32.totalorder %s129, %s130
    %p142 = scmp.eq.s32.totalorder %s17, 1
    %p143 = por %p141, %p142
    %p145 = scmp.ne.s32.totalorder %s130, %s144
    %p146 = scmp.eq.s32.totalorder %s17, 0
    %p147 = por %p145, %p146
    %s148 = ssub.s32 %s18, %s30
    %p149 = scmp.eq.s32.totalorder %s148, 0
    %s151 = sadd.s32 %s150, 1
    %s152 = scalar_select %p149, %s150, %s151
    %p155 = pneg %p149
    %p156 = scmp.eq.s32.totalorder %s11, 1
    %p157 = por %p155, %p156
    %p158 = scmp.ne.s32.totalorder %s150, %s153
    %p159 = scmp.eq.s32.totalorder %s11, 0
    %p160 = por %p158, %p159
    %p161 = scmp.ne.s32.totalorder %s150, %s153
    %p162 = scmp.eq.s32.totalorder %s16, 1
    %p163 = por %p161, %p162
    %p164 = scmp.ne.s32.totalorder %s153, %s154
    %p165 = scmp.eq.s32.totalorder %s16, 0
    %p166 = por %p164, %p165
    %p167 = scmp.ne.s32.totalorder %s153, %s154
    %p168 = scmp.eq.s32.totalorder %s17, 1
    %p169 = por %p167, %p168
    %p171 = scmp.ne.s32.totalorder %s154, %s170
    %p172 = scmp.eq.s32.totalorder %s17, 0
    %p173 = por %p171, %p172
    %p174 = scmp.le.s32.totalorder 1, %s11
    %p175 = scmp.lt.s32.totalorder %s11, 3
    %p176 = pnand %p174, %p175
    %p177 = pneg %p176
    // Predicated region
    $region9: #{triplet_net.1} parent=5 // pred_check
      _
    $region10: #{triplet_net.1} parent=5 // pred_check_branch
      %179 = sbr.rel (%p176) target = $region12
    $region11: #{triplet_net.1} parent=5 // pred_region
      %s180 = ssub.s32 %s11, 1
      // Predicated region
      $region13: #{triplet_net.1} parent=11 // pred_check
        %p181 = pneg %p98
      $region14: #{triplet_net.1} parent=11 // pred_check_branch
        %183 = sbr.rel (%p181) target = $region16
      $region15: #{triplet_net.1} parent=11 // pred_region
        _
      $region16: #{triplet_net.1} parent=11 // pred_fallthru
        _
      // Predicated region
      $region17: #{triplet_net.1} parent=11 // pred_check
        %p184 = pneg %p119
      $region18: #{triplet_net.1} parent=11 // pred_check_branch
        %186 = sbr.rel (%p184) target = $region20
      $region19: #{triplet_net.1} parent=11 // pred_region
        _
      $region20: #{triplet_net.1} parent=11 // pred_fallthru
        _
      // Predicated region
      $region21: #{triplet_net.1} parent=11 // pred_check
        %p187 = pneg %p140
      $region22: #{triplet_net.1} parent=11 // pred_check_branch
        %189 = sbr.rel (%p187) target = $region24
      $region23: #{triplet_net.1} parent=11 // pred_region
        _
      $region24: #{triplet_net.1} parent=11 // pred_fallthru
        _
    $region12: #{triplet_net.1} parent=5 // pred_fallthru
      _
    %p190 = scmp.lt.s32.totalorder %s11, 2
    // Predicated region
    $region25: #{triplet_net.1} parent=5 // pred_check
      %p191 = pneg %p190
    $region26: #{triplet_net.1} parent=5 // pred_check_branch
      %193 = sbr.rel (%p191) target = $region28
    $region27: #{triplet_net.1} parent=5 // pred_region
      // Predicated region
      $region29: #{triplet_net.1} parent=27 // pred_check
        %p194 = pneg %p45
      $region30: #{triplet_net.1} parent=27 // pred_check_branch
        %196 = sbr.rel (%p194) target = $region32
      $region31: #{triplet_net.1} parent=27 // pred_region
        %s197 = smul.u32 4, %s19
        %p198 = scmp.lt.s32.totalorder %s18, 0
        %s199 = scalar_select %p198, %s18, 0
        %p200 = scmp.lt.s32.totalorder %s197, 7
        %s201 = scalar_select %p200, %s197, 7
        %s202 = smul.addr %s199, 8
        %s203 = sadd.s32 %s201, %s202
        %s204 = smul.addr %s203, 4
        %s205 = scalar_lea.vmem %s0, %s204
        %s206 = smul.u32 4, %s19
      $region32: #{triplet_net.1} parent=27 // pred_fallthru
        _
      // Predicated region
      $region33: #{triplet_net.1} parent=27 // pred_check
        %p207 = pneg %p71
      $region34: #{triplet_net.1} parent=27 // pred_check_branch
        %209 = sbr.rel (%p207) target = $region36
      $region35: #{triplet_net.1} parent=27 // pred_region
        %s210 = smul.u32 64, %s19
        %p211 = scmp.lt.s32.totalorder %s210, 127
        %s212 = scalar_select %p211, %s210, 127
        %s213 = smul.addr %s212, 4
        %s214 = scalar_lea.vmem %s1, %s213
        %s215 = smul.u32 64, %s19
      $region36: #{triplet_net.1} parent=27 // pred_fallthru
        _
    $region28: #{triplet_net.1} parent=5 // pred_fallthru
      _
    %p216 = scmp.le.s32.totalorder 1, %s11
    %p217 = scmp.lt.s32.totalorder %s11, 3
    %p218 = pnand %p216, %p217
    %p219 = pneg %p218
    // Predicated region
    $region37: #{triplet_net.1} parent=5 // pred_check
      _
    $region38: #{triplet_net.1} parent=5 // pred_check_branch
      %221 = sbr.rel (%p218) target = $region40
    $region39: #{triplet_net.1} parent=5 // pred_region
      %s222 = ssub.s32 %s11, 1
      %s223 = smul.u32 4, %s21
      %p224 = scmp.lt.s32.totalorder %s20, 0
      %s225 = scalar_select %p224, %s20, 0
      %p226 = scmp.lt.s32.totalorder %s223, 7
      %s227 = scalar_select %p226, %s223, 7
      %s228 = smul.addr %s225, 8
      %s229 = sadd.s32 %s227, %s228
      %s230 = smul.addr %s229, 4
      %s231 = scalar_lea.vmem %s0, %s230
      %p232 = pneg %p51
      %p233 = pneg %p48
      %s234 = smul.u32 64, %s21
      %p235 = scmp.lt.s32.totalorder %s234, 127
      %s236 = scalar_select %p235, %s234, 127
      %s237 = smul.addr %s236, 4
      %s238 = scalar_lea.vmem %s1, %s237
      %p239 = pneg %p77
      %p240 = pneg %p74
      %p241 = pneg %p98
      %p242 = pneg %p95
      %p243 = pneg %p119
      %p244 = pneg %p116
      %p245 = pneg %p140
      %p246 = pneg %p137
      %p247 = pneg %p166
      %p248 = pneg %p163
      %p249 = scmp.lt.s32.totalorder %s20, 0
      %s250 = scalar_select %p249, %s20, 0
      %s251 = smul.addr %s250, 8
      %s252 = scalar_lea.vmem %s5, %s251
      %s253 = smul.u32 4, %s21
      %p254 = scmp.lt.s32.totalorder %s20, 0
      %s255 = scalar_select %p254, %s20, 0
      %p256 = scmp.lt.s32.totalorder %s253, 7
      %s257 = scalar_select %p256, %s253, 7
      %s258 = smul.addr %s255, 8
      %s259 = sadd.s32 %s257, %s258
      %s260 = smul.addr %s259, 4
      %s261 = scalar_lea.vmem %s0, %s260
      %s262 = smul.u32 4, %s21
      %s263 = smul.u32 64, %s21
      %p264 = scmp.lt.s32.totalorder %s263, 127
      %s265 = scalar_select %p264, %s263, 127
      %s266 = smul.addr %s265, 4
      %s267 = scalar_lea.vmem %s1, %s266
      %s268 = smul.u32 64, %s21
      %p269 = scmp.lt.s32.totalorder %s20, 0
      %s270 = scalar_select %p269, %s20, 0
      %s271 = smul.addr %s270, 8
      %s272 = scalar_lea.vmem %s5, %s271
      %p274 = scmp.eq.s32.totalorder %s21, 0
      // Predicated region
      $region41: #{triplet_net.1} parent=39 // pred_check
        %p275 = pneg %p274
      $region42: #{triplet_net.1} parent=39 // pred_check_branch
        %277 = sbr.rel (%p275) target = $region44
      $region43: #{triplet_net.1} parent=39 // pred_region
        %278 = vst [vmem:[#allocation2] sm:$0xff] 0.0
      $region44: #{triplet_net.1} parent=39 // pred_fallthru
        _
      %v279 = vld [vmem:[#allocation2] sm:$0xff]
      %v280 = vld [vmem:[%s261] sm:$0xff]
      %v281 = vld [vmem:[%s261 + $0x8] sm:$0xff]
      %v282 = vld [vmem:[%s267] sm:$0xf]
      %v283 = vld [vmem:[%s267 + $0x4] sm:$0xf]
      %v284 = vld [vmem:[%s267 + $0x8] sm:$0xf]
      %v285 = vld [vmem:[%s267 + $0xc] sm:$0xf]
      %v286 = vld [vmem:[%s267 + $0x10] sm:$0xf]
      %v287 = vld [vmem:[%s267 + $0x14] sm:$0xf]
      %v288 = vld [vmem:[%s267 + $0x18] sm:$0xf]
      %v289 = vld [vmem:[%s267 + $0x1c] sm:$0xf]
      %v290 = vld [vmem:[%s267 + $0x20] sm:$0xf]
      %v291 = vld [vmem:[%s267 + $0x24] sm:$0xf]
      %v292 = vld [vmem:[%s267 + $0x28] sm:$0xf]
      %v293 = vld [vmem:[%s267 + $0x2c] sm:$0xf]
      %v294 = vld [vmem:[%s267 + $0x30] sm:$0xf]
      %v295 = vld [vmem:[%s267 + $0x34] sm:$0xf]
      %v296 = vld [vmem:[%s267 + $0x38] sm:$0xf]
      %v297 = vld [vmem:[%s267 + $0x3c] sm:$0xf]
      %v298 = vld [vmem:[%s267 + $0x40] sm:$0xf]
      %v299 = vld [vmem:[%s267 + $0x44] sm:$0xf]
      %v300 = vld [vmem:[%s267 + $0x48] sm:$0xf]
      %v301 = vld [vmem:[%s267 + $0x4c] sm:$0xf]
      %v302 = vld [vmem:[%s267 + $0x50] sm:$0xf]
      %v303 = vld [vmem:[%s267 + $0x54] sm:$0xf]
      %v304 = vld [vmem:[%s267 + $0x58] sm:$0xf]
      %v305 = vld [vmem:[%s267 + $0x5c] sm:$0xf]
      %v306 = vld [vmem:[%s267 + $0x60] sm:$0xf]
      %v307 = vld [vmem:[%s267 + $0x64] sm:$0xf]
      %v308 = vld [vmem:[%s267 + $0x68] sm:$0xf]
      %v309 = vld [vmem:[%s267 + $0x6c] sm:$0xf]
      %v310 = vld [vmem:[%s267 + $0x70] sm:$0xf]
      %v311 = vld [vmem:[%s267 + $0x74] sm:$0xf]
      %v312 = vld [vmem:[%s267 + $0x78] sm:$0xf]
      %v313 = vld [vmem:[%s267 + $0x7c] sm:$0xf]
      %v314 = vld [vmem:[%s267 + $0x80] sm:$0xf]
      %v315 = vld [vmem:[%s267 + $0x84] sm:$0xf]
      %v316 = vld [vmem:[%s267 + $0x88] sm:$0xf]
      %v317 = vld [vmem:[%s267 + $0x8c] sm:$0xf]
      %v318 = vld [vmem:[%s267 + $0x90] sm:$0xf]
      %v319 = vld [vmem:[%s267 + $0x94] sm:$0xf]
      %v320 = vld [vmem:[%s267 + $0x98] sm:$0xf]
      %v321 = vld [vmem:[%s267 + $0x9c] sm:$0xf]
      %v322 = vld [vmem:[%s267 + $0xa0] sm:$0xf]
      %v323 = vld [vmem:[%s267 + $0xa4] sm:$0xf]
      %v324 = vld [vmem:[%s267 + $0xa8] sm:$0xf]
      %v325 = vld [vmem:[%s267 + $0xac] sm:$0xf]
      %v326 = vld [vmem:[%s267 + $0xb0] sm:$0xf]
      %v327 = vld [vmem:[%s267 + $0xb4] sm:$0xf]
      %v328 = vld [vmem:[%s267 + $0xb8] sm:$0xf]
      %v329 = vld [vmem:[%s267 + $0xbc] sm:$0xf]
      %v330 = vld [vmem:[%s267 + $0xc0] sm:$0xf]
      %v331 = vld [vmem:[%s267 + $0xc4] sm:$0xf]
      %v332 = vld [vmem:[%s267 + $0xc8] sm:$0xf]
      %v333 = vld [vmem:[%s267 + $0xcc] sm:$0xf]
      %v334 = vld [vmem:[%s267 + $0xd0] sm:$0xf]
      %v335 = vld [vmem:[%s267 + $0xd4] sm:$0xf]
      %v336 = vld [vmem:[%s267 + $0xd8] sm:$0xf]
      %v337 = vld [vmem:[%s267 + $0xdc] sm:$0xf]
      %v338 = vld [vmem:[%s267 + $0xe0] sm:$0xf]
      %v339 = vld [vmem:[%s267 + $0xe4] sm:$0xf]
      %v340 = vld [vmem:[%s267 + $0xe8] sm:$0xf]
      %v341 = vld [vmem:[%s267 + $0xec] sm:$0xf]
      %v342 = vld [vmem:[%s267 + $0xf0] sm:$0xf]
      %v343 = vld [vmem:[%s267 + $0xf4] sm:$0xf]
      %v344 = vld [vmem:[%s267 + $0xf8] sm:$0xf]
      %v345 = vld [vmem:[%s267 + $0xfc] sm:$0xf]
      %v348 = vunpack.c.l.b16 %v280
      %v349 = vunpack.c.h.b16 %v280
      %v350 = vunpack.c.l.b16 %v281
      %v351 = vunpack.c.h.b16 %v281
      %v352 = vpack.c.b16 %v348, %v348
      %v353 = vpack.c.b16 %v349, %v349
      %v354 = vpack.c.b16 %v350, %v350
      %v355 = vpack.c.b16 %v351, %v351
      %v424 = vunpack.c.l.b16 %v282
      %v425 = vunpack.c.l.b16 %v283
      %v426 = vunpack.c.l.b16 %v284
      %v427 = vunpack.c.l.b16 %v285
      %v428 = vunpack.c.l.b16 %v286
      %v429 = vunpack.c.l.b16 %v287
      %v430 = vunpack.c.l.b16 %v288
      %v431 = vunpack.c.l.b16 %v289
      %v432 = vunpack.c.l.b16 %v290
      %v433 = vunpack.c.l.b16 %v291
      %v434 = vunpack.c.l.b16 %v292
      %v435 = vunpack.c.l.b16 %v293
      %v436 = vunpack.c.l.b16 %v294
      %v437 = vunpack.c.l.b16 %v295
      %v438 = vunpack.c.l.b16 %v296
      %v439 = vunpack.c.l.b16 %v297
      %v440 = vunpack.c.l.b16 %v298
      %v441 = vunpack.c.l.b16 %v299
      %v442 = vunpack.c.l.b16 %v300
      %v443 = vunpack.c.l.b16 %v301
      %v444 = vunpack.c.l.b16 %v302
      %v445 = vunpack.c.l.b16 %v303
      %v446 = vunpack.c.l.b16 %v304
      %v447 = vunpack.c.l.b16 %v305
      %v448 = vunpack.c.l.b16 %v306
      %v449 = vunpack.c.l.b16 %v307
      %v450 = vunpack.c.l.b16 %v308
      %v451 = vunpack.c.l.b16 %v309
      %v452 = vunpack.c.l.b16 %v310
      %v453 = vunpack.c.l.b16 %v311
      %v454 = vunpack.c.l.b16 %v312
      %v455 = vunpack.c.l.b16 %v313
      %v456 = vunpack.c.l.b16 %v314
      %v457 = vunpack.c.l.b16 %v315
      %v458 = vunpack.c.l.b16 %v316
      %v459 = vunpack.c.l.b16 %v317
      %v460 = vunpack.c.l.b16 %v318
      %v461 = vunpack.c.l.b16 %v319
      %v462 = vunpack.c.l.b16 %v320
      %v463 = vunpack.c.l.b16 %v321
      %v464 = vunpack.c.l.b16 %v322
      %v465 = vunpack.c.l.b16 %v323
      %v466 = vunpack.c.l.b16 %v324
      %v467 = vunpack.c.l.b16 %v325
      %v468 = vunpack.c.l.b16 %v326
      %v469 = vunpack.c.l.b16 %v327
      %v470 = vunpack.c.l.b16 %v328
      %v471 = vunpack.c.l.b16 %v329
      %v472 = vunpack.c.l.b16 %v330
      %v473 = vunpack.c.l.b16 %v331
      %v474 = vunpack.c.l.b16 %v332
      %v475 = vunpack.c.l.b16 %v333
      %v476 = vunpack.c.l.b16 %v334
      %v477 = vunpack.c.l.b16 %v335
      %v478 = vunpack.c.l.b16 %v336
      %v479 = vunpack.c.l.b16 %v337
      %v480 = vunpack.c.l.b16 %v338
      %v481 = vunpack.c.l.b16 %v339
      %v482 = vunpack.c.l.b16 %v340
      %v483 = vunpack.c.l.b16 %v341
      %v484 = vunpack.c.l.b16 %v342
      %v485 = vunpack.c.l.b16 %v343
      %v486 = vunpack.c.l.b16 %v344
      %v487 = vunpack.c.l.b16 %v345
      %v488 = vpack.c.b16 %v425, %v424
      %v489 = vpack.c.b16 %v427, %v426
      %v490 = vpack.c.b16 %v429, %v428
      %v491 = vpack.c.b16 %v431, %v430
      %v492 = vpack.c.b16 %v433, %v432
      %v493 = vpack.c.b16 %v435, %v434
      %v494 = vpack.c.b16 %v437, %v436
      %v495 = vpack.c.b16 %v439, %v438
      %v496 = vpack.c.b16 %v441, %v440
      %v497 = vpack.c.b16 %v443, %v442
      %v498 = vpack.c.b16 %v445, %v444
      %v499 = vpack.c.b16 %v447, %v446
      %v500 = vpack.c.b16 %v449, %v448
      %v501 = vpack.c.b16 %v451, %v450
      %v502 = vpack.c.b16 %v453, %v452
      %v503 = vpack.c.b16 %v455, %v454
      %v504 = vpack.c.b16 %v457, %v456
      %v505 = vpack.c.b16 %v459, %v458
      %v506 = vpack.c.b16 %v461, %v460
      %v507 = vpack.c.b16 %v463, %v462
      %v508 = vpack.c.b16 %v465, %v464
      %v509 = vpack.c.b16 %v467, %v466
      %v510 = vpack.c.b16 %v469, %v468
      %v511 = vpack.c.b16 %v471, %v470
      %v512 = vpack.c.b16 %v473, %v472
      %v513 = vpack.c.b16 %v475, %v474
      %v514 = vpack.c.b16 %v477, %v476
      %v515 = vpack.c.b16 %v479, %v478
      %v516 = vpack.c.b16 %v481, %v480
      %v517 = vpack.c.b16 %v483, %v482
      %v518 = vpack.c.b16 %v485, %v484
      %v519 = vpack.c.b16 %v487, %v486
      %552 = vmatprep.subr.bf16.mxu0 0
      %553 = vmatpush1.bf16.msra.mxu0 %v488
      %554 = vmatprep.subr.bf16.mxu0 0
      %555 = vmatpush1.bf16.msra.mxu0 %v489
      %556 = vmatprep.subr.bf16.mxu0 0
      %557 = vmatpush1.bf16.msra.mxu0 %v490
      %558 = vmatprep.subr.bf16.mxu0 0
      %559 = vmatpush1.bf16.msra.mxu0 %v491
      %560 = vmatprep.subr.bf16.mxu0 0
      %561 = vmatpush1.bf16.msra.mxu0 %v492
      %562 = vmatprep.subr.bf16.mxu0 0
      %563 = vmatpush1.bf16.msra.mxu0 %v493
      %564 = vmatprep.subr.bf16.mxu0 0
      %565 = vmatpush1.bf16.msra.mxu0 %v494
      %566 = vmatprep.subr.bf16.mxu0 0
      %567 = vmatpush1.bf16.msra.mxu0 %v495
      %568 = vmatprep.subr.bf16.mxu0 0
      %569 = vmatpush1.bf16.msra.mxu0 %v496
      %570 = vmatprep.subr.bf16.mxu0 0
      %571 = vmatpush1.bf16.msra.mxu0 %v497
      %572 = vmatprep.subr.bf16.mxu0 0
      %573 = vmatpush1.bf16.msra.mxu0 %v498
      %574 = vmatprep.subr.bf16.mxu0 0
      %575 = vmatpush1.bf16.msra.mxu0 %v499
      %576 = vmatprep.subr.bf16.mxu0 0
      %577 = vmatpush1.bf16.msra.mxu0 %v500
      %578 = vmatprep.subr.bf16.mxu0 0
      %579 = vmatpush1.bf16.msra.mxu0 %v501
      %580 = vmatprep.subr.bf16.mxu0 0
      %581 = vmatpush1.bf16.msra.mxu0 %v502
      %582 = vmatprep.subr.bf16.mxu0 0
      %583 = vmatpush1.bf16.msra.mxu0 %v503
      %584 = vmatprep.mubr.bf16.mxu0 %v353
      %585 = vmatmul.mubr.bf16.gmra.mrb[0].mxu0 %v352
      %v586 = vpop.f32.mrb[0].mxu0
      %v587 = vadd.f32 0.0, %v586
      %v588 = vpop.f32.mrb[0].mxu0
      %v589 = vpop.f32.mrb[0].mxu0
      %v590 = vpop.f32.mrb[0].mxu0
      %591 = vdwg.mxu0
      %592 = vmatprep.subr.bf16.mxu0 0
      %593 = vmatpush1.bf16.msra.mxu0 %v504
      %594 = vmatprep.subr.bf16.mxu0 0
      %595 = vmatpush1.bf16.msra.mxu0 %v505
      %596 = vmatprep.subr.bf16.mxu0 0
      %597 = vmatpush1.bf16.msra.mxu0 %v506
      %598 = vmatprep.subr.bf16.mxu0 0
      %599 = vmatpush1.bf16.msra.mxu0 %v507
      %600 = vmatprep.subr.bf16.mxu0 0
      %601 = vmatpush1.bf16.msra.mxu0 %v508
      %602 = vmatprep.subr.bf16.mxu0 0
      %603 = vmatpush1.bf16.msra.mxu0 %v509
      %604 = vmatprep.subr.bf16.mxu0 0
      %605 = vmatpush1.bf16.msra.mxu0 %v510
      %606 = vmatprep.subr.bf16.mxu0 0
      %607 = vmatpush1.bf16.msra.mxu0 %v511
      %608 = vmatprep.subr.bf16.mxu0 0
      %609 = vmatpush1.bf16.msra.mxu0 %v512
      %610 = vmatprep.subr.bf16.mxu0 0
      %611 = vmatpush1.bf16.msra.mxu0 %v513
      %612 = vmatprep.subr.bf16.mxu0 0
      %613 = vmatpush1.bf16.msra.mxu0 %v514
      %614 = vmatprep.subr.bf16.mxu0 0
      %615 = vmatpush1.bf16.msra.mxu0 %v515
      %616 = vmatprep.subr.bf16.mxu0 0
      %617 = vmatpush1.bf16.msra.mxu0 %v516
      %618 = vmatprep.subr.bf16.mxu0 0
      %619 = vmatpush1.bf16.msra.mxu0 %v517
      %620 = vmatprep.subr.bf16.mxu0 0
      %621 = vmatpush1.bf16.msra.mxu0 %v518
      %622 = vmatprep.subr.bf16.mxu0 0
      %623 = vmatpush1.bf16.msra.mxu0 %v519
      %624 = vmatprep.mubr.bf16.mxu0 %v355
      %625 = vmatmul.mubr.bf16.gmra.mrb[0].mxu0 %v354
      %v626 = vpop.f32.mrb[0].mxu0
      %v627 = vadd.f32 %v587, %v626
      %v628 = vpop.f32.mrb[0].mxu0
      %v629 = vpop.f32.mrb[0].mxu0
      %v630 = vpop.f32.mrb[0].mxu0
      %631 = vdwg.mxu0
      %v632 = vadd.f32 %v279, %v627
      %633 = vst [vmem:[#allocation2] sm:$0xff] %v632
      %p634 = scmp.eq.s32.totalorder %s21, 1
      // Predicated region
      $region45: #{triplet_net.1} parent=39 // pred_check
        %p635 = pneg %p634
      $region46: #{triplet_net.1} parent=39 // pred_check_branch
        %637 = sbr.rel (%p635) target = $region48
      $region47: #{triplet_net.1} parent=39 // pred_region
        %v638 = vld [vmem:[#allocation2] sm:$0xff]
        %v639 = vld [vmem:[%s2] sm:$0x1]
        %v641 = vlaneseq
        %v642 = vshrl.u32 %v641, 7
        %v643 = vsub.s32 0, %v642
        %v644 = vrot.slane %v639, %v643
        %v646 = vadd.f32 %v638, %v644
        %v647 = vmax.f32 %v646, 0.0
        %v648 = vpack.c.bf16 %v647, %v647
        %v649 = vld [vmem:[%s3] sm:$0xf]
        %v650 = vld [vmem:[%s3 + $0x4] sm:$0xf]
        %v651 = vld [vmem:[%s3 + $0x8] sm:$0xf]
        %v652 = vld [vmem:[%s3 + $0xc] sm:$0xf]
        %v653 = vld [vmem:[%s3 + $0x10] sm:$0xf]
        %v654 = vld [vmem:[%s3 + $0x14] sm:$0xf]
        %v655 = vld [vmem:[%s3 + $0x18] sm:$0xf]
        %v656 = vld [vmem:[%s3 + $0x1c] sm:$0xf]
        %v657 = vld [vmem:[%s3 + $0x20] sm:$0xf]
        %v658 = vld [vmem:[%s3 + $0x24] sm:$0xf]
        %v659 = vld [vmem:[%s3 + $0x28] sm:$0xf]
        %v660 = vld [vmem:[%s3 + $0x2c] sm:$0xf]
        %v661 = vld [vmem:[%s3 + $0x30] sm:$0xf]
        %v662 = vld [vmem:[%s3 + $0x34] sm:$0xf]
        %v663 = vld [vmem:[%s3 + $0x38] sm:$0xf]
        %v664 = vld [vmem:[%s3 + $0x3c] sm:$0xf]
        %v665 = vld [vmem:[%s4] sm:$0x1]
        %v667 = vlaneseq
        %v668 = vshrl.u32 %v667, 7
        %v669 = vsub.s32 0, %v668
        %v670 = vrot.slane %v665, %v669
        %v688 = vunpack.c.l.b16 %v649
        %v689 = vunpack.c.l.b16 %v650
        %v690 = vunpack.c.l.b16 %v651
        %v691 = vunpack.c.l.b16 %v652
        %v692 = vunpack.c.l.b16 %v653
        %v693 = vunpack.c.l.b16 %v654
        %v694 = vunpack.c.l.b16 %v655
        %v695 = vunpack.c.l.b16 %v656
        %v696 = vunpack.c.l.b16 %v657
        %v697 = vunpack.c.l.b16 %v658
        %v698 = vunpack.c.l.b16 %v659
        %v699 = vunpack.c.l.b16 %v660
        %v700 = vunpack.c.l.b16 %v661
        %v701 = vunpack.c.l.b16 %v662
        %v702 = vunpack.c.l.b16 %v663
        %v703 = vunpack.c.l.b16 %v664
        %v704 = vpack.c.b16 %v689, %v688
        %v705 = vpack.c.b16 %v691, %v690
        %v706 = vpack.c.b16 %v693, %v692
        %v707 = vpack.c.b16 %v695, %v694
        %v708 = vpack.c.b16 %v697, %v696
        %v709 = vpack.c.b16 %v699, %v698
        %v710 = vpack.c.b16 %v701, %v700
        %v711 = vpack.c.b16 %v703, %v702
        %720 = vmatprep.subr.bf16.mxu0 0
        %721 = vmatpush1.bf16.msra.mxu0 %v704
        %722 = vmatprep.subr.bf16.mxu0 0
        %723 = vmatpush1.bf16.msra.mxu0 %v705
        %724 = vmatprep.subr.bf16.mxu0 0
        %725 = vmatpush1.bf16.msra.mxu0 %v706
        %726 = vmatprep.subr.bf16.mxu0 0
        %727 = vmatpush1.bf16.msra.mxu0 %v707
        %728 = vmatprep.subr.bf16.mxu0 0
        %729 = vmatpush1.bf16.msra.mxu0 %v708
        %730 = vmatprep.subr.bf16.mxu0 0
        %731 = vmatpush1.bf16.msra.mxu0 %v709
        %732 = vmatprep.subr.bf16.mxu0 0
        %733 = vmatpush1.bf16.msra.mxu0 %v710
        %734 = vmatprep.subr.bf16.mxu0 0
        %735 = vmatpush1.bf16.msra.mxu0 %v711
        %736 = vmatprep.subr.bf16.mxu0 0
        %737 = vmatpush1.bf16.msra.mxu0 0
        %738 = vmatprep.subr.bf16.mxu0 0
        %739 = vmatpush1.bf16.msra.mxu0 0
        %740 = vmatprep.subr.bf16.mxu0 0
        %741 = vmatpush1.bf16.msra.mxu0 0
        %742 = vmatprep.subr.bf16.mxu0 0
        %743 = vmatpush1.bf16.msra.mxu0 0
        %744 = vmatprep.subr.bf16.mxu0 0
        %745 = vmatpush1.bf16.msra.mxu0 0
        %746 = vmatprep.subr.bf16.mxu0 0
        %747 = vmatpush1.bf16.msra.mxu0 0
        %748 = vmatprep.subr.bf16.mxu0 0
        %749 = vmatpush1.bf16.msra.mxu0 0
        %750 = vmatprep.subr.bf16.mxu0 0
        %751 = vmatpush1.bf16.msra.mxu0 0
        %752 = vmatprep.mubr.bf16.mxu0 0
        %753 = vmatmul.mubr.bf16.gmra.mrb[0].mxu0 %v648
        %v754 = vpop.f32.mrb[0].mxu0
        %v755 = vadd.f32 %v670, %v754
        %v756 = vpop.f32.mrb[0].mxu0
        %v757 = vpop.f32.mrb[0].mxu0
        %v758 = vpop.f32.mrb[0].mxu0
        %759 = vdwg.mxu0
        %760 = vst [vmem:[%s272] sm:$0xff] %v755
      $region48: #{triplet_net.1} parent=39 // pred_fallthru
        _
      %p761 = scmp.lt.s32.totalorder %s20, 0
      %s762 = scalar_select %p761, %s20, 0
      %s763 = smul.addr %s762, 8
      %s764 = scalar_lea.vmem %s5, %s763
      // Predicated region
      $region49: #{triplet_net.1} parent=39 // pred_check
        %p765 = pneg %p163
      $region50: #{triplet_net.1} parent=39 // pred_check_branch
        %767 = sbr.rel (%p765) target = $region52
      $region51: #{triplet_net.1} parent=39 // pred_region
        _
      $region52: #{triplet_net.1} parent=39 // pred_fallthru
        _
      // Predicated region
      $region53: #{triplet_net.1} parent=39 // pred_check
        %p768 = pneg %p163
      $region54: #{triplet_net.1} parent=39 // pred_check_branch
        %770 = sbr.rel (%p768) target = $region56
      $region55: #{triplet_net.1} parent=39 // pred_region
        %p771 = scmp.lt.s32.totalorder %s20, 0
        %s772 = scalar_select %p771, %s20, 0
        %s773 = smul.addr %s772, 8
        %s774 = scalar_lea.vmem %s5, %s773
      $region56: #{triplet_net.1} parent=39 // pred_fallthru
        _
    $region40: #{triplet_net.1} parent=5 // pred_fallthru
      _
    %p775 = scmp.le.s32.totalorder 2, %s11
    // Predicated region
    $region57: #{triplet_net.1} parent=5 // pred_check
      %p776 = pneg %p775
    $region58: #{triplet_net.1} parent=5 // pred_check_branch
      %778 = sbr.rel (%p776) target = $region60
    $region59: #{triplet_net.1} parent=5 // pred_region
      %s779 = ssub.s32 %s11, 2
    $region60: #{triplet_net.1} parent=5 // pred_fallthru
      _
  $region6: #{triplet_net.1} parent=0 // loop_footer
    %s15 = sadd.s32 1, %s11
  $region7: #{triplet_net.1} parent=0 // loop_footer_branch
    %10 = sbr.rel target = $region3
  $region8: #{triplet_net.1} parent=0 // loop_exit
    _

</llo_original>
